<compile_context>
chip_gen: v5e
topology: v5e:2x2
jax: 0.10.0
libtpu: 0.0.40
codegen_flags: <defaults>
</compile_context>

<pallas_src>
import functools

import jax
import jax.numpy as jnp
from jax.experimental import pallas as pl
from jax.experimental.pallas import tpu as pltpu

LEAKY_SLOPE = 0.01   # nn.LeakyReLU() default
BN_EPS = 1e-5        # nn.BatchNorm1d default eps


def _round_up(x, m):
    return (x + m - 1) // m * m


def _pick_co_tiling(c_out):
    """Return (c_out_pad, co_tile): 16-aligned channels, <=256-row output tiles."""
    c_out_pad = _round_up(c_out, 16)
    if c_out_pad <= 256:
        return c_out_pad, c_out_pad           # single C_out tile: x streamed once
    for tile in (256, 192, 128):
        if c_out_pad % tile == 0:
            return c_out_pad, tile
    c_out_pad = _round_up(c_out, 256)         # pad further rather than tiny tiles
    return c_out_pad, 256


def _conv_taps(x_ref, w_ref, ks, dilation, l_tile):
    """Dilated conv tile as ks accumulating MXU matmuls (f32 accumulation).

    x_ref : (c_in_pad, l_tile + halo_pad) bf16 halo window
    w_ref : (ks, co_tile, c_in_pad)       bf16 spectral-normalized taps
    """
    acc = jnp.dot(w_ref[0], x_ref[:, 0:l_tile], preferred_element_type=jnp.float32)
    for k in range(1, ks):                    # static, ks is small
        off = k * dilation
        acc = acc + jnp.dot(w_ref[k], x_ref[:, off:off + l_tile],
                            preferred_element_type=jnp.float32)
    return acc


def _stats_kernel(x_ref, w_ref, sum_ref, sq_ref, *, ks, dilation, l_tile, rem):
    """Pass 1: per-(batch, C_out-tile) BN statistics of the conv output.

    sum_ref / sq_ref : (co_tile, 1) f32, resident over the length axis only
    (per-batch partials -> batch axis stays 'parallel' for dual-TC v7x).
    """
    @pl.when(pl.program_id(2) == 0)
    def _():
        sum_ref[...] = jnp.zeros_like(sum_ref)
        sq_ref[...] = jnp.zeros_like(sq_ref)

    y = _conv_taps(x_ref, w_ref, ks, dilation, l_tile)

    def _accumulate(v):
        sum_ref[...] = sum_ref[...] + jnp.sum(v, axis=1, keepdims=True)
        sq_ref[...] = sq_ref[...] + jnp.sum(v * v, axis=1, keepdims=True)

    if rem:  # static: only the final length tile carries padded lanes
        last = pl.program_id(2) == pl.num_programs(2) - 1

        @pl.when(last)
        def _():
            lane = jax.lax.broadcasted_iota(jnp.int32, y.shape, 1)
            _accumulate(jnp.where(lane < rem, y, 0.0))

        @pl.when(jnp.logical_not(last))
        def _():
            _accumulate(y)
    else:
        _accumulate(y)


def _conv_bn_lrelu_kernel(x_ref, w_ref, scale_ref, shift_ref, o_ref, *,
                          ks, dilation, l_tile):
    """Pass 2: recompute the conv tile, apply folded BN affine + LeakyReLU."""
    y = _conv_taps(x_ref, w_ref, ks, dilation, l_tile)
    v = y * scale_ref[...] + shift_ref[...]
    o_ref[...] = jnp.where(v >= 0, v, LEAKY_SLOPE * v)


def _spectral_normalize(weight, u):
    """One power iteration, matching torch.nn.utils.spectral_norm forward."""
    c_out = weight.shape[0]
    w_mat = weight.reshape(c_out, -1)

    def l2n(v):
        return v / (jnp.linalg.norm(v) + 1e-12)

    v = l2n(w_mat.T @ u)
    u_new = l2n(w_mat @ v)
    sigma = u_new @ (w_mat @ v)
    return weight / sigma


def bnsn_conv1d_dblock(x, weight, bias, gamma, beta, u, *, kernel_size, dilation):
    """x: (B, C_in, L) f32. Returns (B, C_out, out_len) f32 (out_len == L for odd ks)."""
    del bias  # exactly cancelled by training-mode BatchNorm mean subtraction
    B, C_in, L = x.shape
    C_out = weight.shape[0]
    ks = kernel_size
    pad = dilation * ((ks - 1) // 2)
    halo = dilation * (ks - 1)
    out_len = L + 2 * pad - halo

    # ---- tile geometry ----
    c_in_pad = _round_up(C_in, 16)                 # bf16 packs 16 rows / vreg
    c_out_pad, co_tile = _pick_co_tiling(C_out)
    n_co = c_out_pad // co_tile
    l_tile = min(1024, _round_up(out_len, 128))    # lane-dense, ~roofline tiles
    l_pad = _round_up(out_len, l_tile)
    n_l = l_pad // l_tile
    rem = out_len % l_tile                         # valid lanes in the final tile
    halo_pad = _round_up(halo, 128)
    l_w = l_tile + halo_pad

    # ---- layout / parameter plumbing (plain JAX, done once) ----
    w_sn = _spectral_normalize(weight, u)                              # (C_out, C_in, ks)
    w_p = jnp.pad(w_sn, ((0, c_out_pad - C_out), (0, c_in_pad - C_in), (0, 0)))
    w3 = jnp.transpose(w_p, (2, 0, 1)).astype(jnp.bfloat16)            # (ks, Co, Ci)

    total_len = (n_l - 1) * l_tile + l_w
    xp = jnp.pad(x, ((0, 0), (0, c_in_pad - C_in), (pad, total_len - L - pad)))
    # Tile-major halo layout: each length tile carries its own (<=halo_pad-lane)
    # halo, so no ks-wide im2col and no overlapping BlockSpec windows are needed.
    xh = jnp.stack([xp[:, :, t * l_tile: t * l_tile + l_w] for t in range(n_l)],
                   axis=1).astype(jnp.bfloat16).reshape(B * n_l, c_in_pad, l_w)

    x_spec = pl.BlockSpec((None, c_in_pad, l_w), lambda co, b, l: (b * n_l + l, 0, 0))
    w_spec = pl.BlockSpec((ks, co_tile, c_in_pad), lambda co, b, l: (0, co, 0))

    # ---- VMEM budget from the actual double-buffered tile footprint ----
    x_blk = c_in_pad * l_w * 2
    w_blk = ks * co_tile * c_in_pad * 2
    out_blk = co_tile * l_tile * 4
    acc_tmp = 4 * out_blk                          # f32 accumulator / mask temporaries
    need = 2 * (x_blk + w_blk + out_blk + 2 * co_tile * 128 * 4) + acc_tmp
    vmem_limit = int(min(64 * 2 ** 20, max(32 * 2 ** 20, need + 8 * 2 ** 20)))

    grid = (n_co, B, n_l)
    conv_flops = 2 * B * l_pad * ks * c_in_pad * c_out_pad

    # ---- pass 1: streamed BN statistics (no conv intermediate hits HBM) ----
    bytes1 = n_co * xh.size * 2 + n_co * w3.size * 2 + 2 * B * c_out_pad * 4
    sums, sqs = pl.pallas_call(
        functools.partial(_stats_kernel, ks=ks, dilation=dilation,
                          l_tile=l_tile, rem=rem),
        grid=grid,
        in_specs=[x_spec, w_spec],
        out_specs=[
            pl.BlockSpec((None, co_tile, 1), lambda co, b, l: (b, co, 0)),
            pl.BlockSpec((None, co_tile, 1), lambda co, b, l: (b, co, 0)),
        ],
        out_shape=(
            jax.ShapeDtypeStruct((B, c_out_pad, 1), jnp.float32),
            jax.ShapeDtypeStruct((B, c_out_pad, 1), jnp.float32),
        ),
        compiler_params=pltpu.CompilerParams(
            dimension_semantics=("parallel", "parallel", "arbitrary"),
            vmem_limit_bytes=vmem_limit),
        cost_estimate=pl.CostEstimate(
            flops=conv_flops + 3 * B * c_out_pad * l_pad,
            transcendentals=0, bytes_accessed=bytes1),
    )(xh, w3)

    # ---- fold BN into per-channel scale / shift (tiny per-channel JAX math) ----
    # TODO(synk): single-pass E[x^2]-E[x]^2 in f32; switch to shifted/Kahan
    # accumulation if tolerances ever tighten for very long sequences.
    count = B * out_len
    mean = jnp.sum(sums[:, :, 0], axis=0) / count
    var = jnp.maximum(jnp.sum(sqs[:, :, 0], axis=0) / count - mean * mean, 0.0)
    gamma_p = jnp.pad(gamma, (0, c_out_pad - C_out))
    beta_p = jnp.pad(beta, (0, c_out_pad - C_out))
    g_inv = gamma_p * jax.lax.rsqrt(var + BN_EPS)
    scale = g_inv.reshape(c_out_pad, 1).astype(jnp.float32)
    shift = (beta_p - mean * g_inv).reshape(c_out_pad, 1).astype(jnp.float32)

    # ---- pass 2: recompute conv tile + affine + LeakyReLU, write final only ----
    bytes2 = (n_co * xh.size * 2 + n_co * w3.size * 2
              + B * c_out_pad * l_pad * 4 + 2 * c_out_pad * 4)
    y = pl.pallas_call(
        functools.partial(_conv_bn_lrelu_kernel, ks=ks, dilation=dilation,
                          l_tile=l_tile),
        grid=grid,
        in_specs=[
            x_spec, w_spec,
            pl.BlockSpec((co_tile, 1), lambda co, b, l: (co, 0)),
            pl.BlockSpec((co_tile, 1), lambda co, b, l: (co, 0)),
        ],
        out_specs=pl.BlockSpec((None, co_tile, l_tile), lambda co, b, l: (b, co, l)),
        out_shape=jax.ShapeDtypeStruct((B, c_out_pad, l_pad), jnp.float32),
        compiler_params=pltpu.CompilerParams(
            dimension_semantics=("parallel", "parallel", "parallel"),
            vmem_limit_bytes=vmem_limit),
        cost_estimate=pl.CostEstimate(
            flops=conv_flops + 4 * B * c_out_pad * l_pad,
            transcendentals=0, bytes_accessed=bytes2),
    )(xh, w3, scale, shift)

    # Slice off channel / lane padding; output is already in (B, C_out, L) layout.
    return y[:, :C_out, :out_len]


def _reference(x, weight, bias, gamma, beta, u, *, kernel_size, dilation):
    """Pure-JAX reference mirroring the PyTorch forward (bf16 conv like the kernel)."""
    ks = kernel_size
    pad = dilation * ((ks - 1) // 2)
    w_sn = _spectral_normalize(weight, u)
    y = jax.lax.conv_general_dilated(
        x.astype(jnp.bfloat16), w_sn.astype(jnp.bfloat16),
        window_strides=(1,), padding=[(pad, pad)], rhs_dilation=(dilation,),
        dimension_numbers=("NCH", "OIH", "NCH"),
        preferred_element_type=jnp.float32)
    y = y + bias[None, :, None]     # cancelled by training-mode BN (kept for equivalence)
    mean = jnp.mean(y, axis=(0, 2), keepdims=True)
    var = jnp.mean((y - mean) ** 2, axis=(0, 2), keepdims=True)
    yn = (y - mean) * jax.lax.rsqrt(var + BN_EPS)
    yn = yn * gamma[None, :, None] + beta[None, :, None]
    return jnp.where(yn >= 0, yn, LEAKY_SLOPE * yn)


if __name__ == "__main__":
    B, C_in, C_out, L = 2, 4, 8, 16
    ks, dilation = 3, 2

    key = jax.random.PRNGKey(0)
    k1, k2, k3, k4, k5, k6 = jax.random.split(key, 6)
    x = jax.random.normal(k1, (B, C_in, L), jnp.float32)
    weight = 0.3 * jax.random.normal(k2, (C_out, C_in, ks), jnp.float32)
    bias = 0.1 * jax.random.normal(k3, (C_out,), jnp.float32)
    gamma = 1.0 + 0.1 * jax.random.normal(k4, (C_out,), jnp.float32)
    beta = 0.1 * jax.random.normal(k5, (C_out,), jnp.float32)
    u0 = jax.random.normal(k6, (C_out,), jnp.float32)
    u0 = u0 / (jnp.linalg.norm(u0) + 1e-12)   # spectral-norm `u` buffer
    # TODO(synk): torch's spectral_norm also updates the `u` buffer in training
    # mode; the updated u is not returned here (single power-iteration forward).

    out = bnsn_conv1d_dblock(x, weight, bias, gamma, beta, u0,
                             kernel_size=ks, dilation=dilation)
    out = jax.block_until_ready(out)

    ref = _reference(x, weight, bias, gamma, beta, u0,
                     kernel_size=ks, dilation=dilation)
    assert out.shape == (B, C_out, L), out.shape
    err = float(jnp.max(jnp.abs(out - ref)))
    assert err < 2e-3, err
    print("KERNEL_OK")
</pallas_src>

<mosaic_0001>
module attributes {stable_mosaic.version = 11 : i64} {
  func.func @_stats_kernel(%arg0: i32, %arg1: i32, %arg2: i32, %arg3: memref<1x16x256xbf16, #tpu.memory_space<vmem>>, %arg4: memref<3x16x16xbf16, #tpu.memory_space<vmem>>, %arg5: memref<1x16x1xf32, #tpu.memory_space<vmem>>, %arg6: memref<1x16x1xf32, #tpu.memory_space<vmem>>) attributes {dimension_semantics = [#tpu.dimension_semantics<parallel>, #tpu.dimension_semantics<parallel>, #tpu.dimension_semantics<arbitrary>], iteration_bounds = array<i64: 1, 2, 1>, scalar_prefetch = 0 : i64, scratch_operands = 0 : i64, tpu.core_type = #tpu.core_type<tc>, window_params = [{transform_indices = @transform_0, window_bounds = array<i64: 1, 16, 256>}, {transform_indices = @transform_1, window_bounds = array<i64: 3, 16, 16>}, {transform_indices = @transform_2, window_bounds = array<i64: 1, 16, 1>}, {transform_indices = @transform_3, window_bounds = array<i64: 1, 16, 1>}]} {
    %c0_i32 = arith.constant 0 : i32
    %0 = arith.cmpi eq, %arg2, %c0_i32 : i32
    %1 = arith.extui %0 : i1 to i32
    %c0_i32_0 = arith.constant 0 : i32
    %2 = arith.cmpi ne, %1, %c0_i32_0 : i32
    scf.if %2 {
      %cst_20 = arith.constant 0.000000e+00 : f32
      %26 = vector.broadcast %cst_20 : f32 to vector<16x1xf32>
      %c0_21 = arith.constant 0 : index
      %c0_22 = arith.constant 0 : index
      %c0_23 = arith.constant 0 : index
      %27 = vector.load %arg5[%c0_21, %c0_22, %c0_23] : memref<1x16x1xf32, #tpu.memory_space<vmem>>, vector<1x16x1xf32>
      %28 = vector.shape_cast %27 : vector<1x16x1xf32> to vector<16x1xf32>
      %29 = vector.shape_cast %26 : vector<16x1xf32> to vector<1x16x1xf32>
      tpu.vector_store %arg5[%c0_21, %c0_22, %c0_23], %29 {strides = array<i32>} : memref<1x16x1xf32, #tpu.memory_space<vmem>>, vector<1x16x1xf32>,
      %cst_24 = arith.constant 0.000000e+00 : f32
      %30 = vector.broadcast %cst_24 : f32 to vector<16x1xf32>
      %c0_25 = arith.constant 0 : index
      %c0_26 = arith.constant 0 : index
      %c0_27 = arith.constant 0 : index
      %31 = vector.load %arg6[%c0_25, %c0_26, %c0_27] : memref<1x16x1xf32, #tpu.memory_space<vmem>>, vector<1x16x1xf32>
      %32 = vector.shape_cast %31 : vector<1x16x1xf32> to vector<16x1xf32>
      %33 = vector.shape_cast %30 : vector<16x1xf32> to vector<1x16x1xf32>
      tpu.vector_store %arg6[%c0_25, %c0_26, %c0_27], %33 {strides = array<i32>} : memref<1x16x1xf32, #tpu.memory_space<vmem>>, vector<1x16x1xf32>,
    } else {
    }
    %c0 = arith.constant 0 : index
    %c0_1 = arith.constant 0 : index
    %c0_2 = arith.constant 0 : index
    %3 = vector.load %arg4[%c0, %c0_1, %c0_2] : memref<3x16x16xbf16, #tpu.memory_space<vmem>>, vector<1x16x16xbf16>
    %4 = vector.shape_cast %3 : vector<1x16x16xbf16> to vector<16x16xbf16>
    %c0_3 = arith.constant 0 : index
    %c0_4 = arith.constant 0 : index
    %c0_5 = arith.constant 0 : index
    %5 = vector.load %arg3[%c0_3, %c0_4, %c0_5] : memref<1x16x256xbf16, #tpu.memory_space<vmem>>, vector<1x16x128xbf16>
    %6 = vector.shape_cast %5 : vector<1x16x128xbf16> to vector<16x128xbf16>
    %cst = arith.constant dense<0.000000e+00> : vector<16x128xf32>
    %7 = tpu.matmul %4, %6, %cst {dimension_numbers = #tpu.dot_dimension_numbers<[1], [0], [0], [1], [0, 0, 1, 1], [], []>} : vector<16x16xbf16>, vector<16x128xbf16>, vector<16x128xf32> -> vector<16x128xf32>
    %c1 = arith.constant 1 : index
    %c0_6 = arith.constant 0 : index
    %c0_7 = arith.constant 0 : index
    %8 = vector.load %arg4[%c1, %c0_6, %c0_7] : memref<3x16x16xbf16, #tpu.memory_space<vmem>>, vector<1x16x16xbf16>
    %9 = vector.shape_cast %8 : vector<1x16x16xbf16> to vector<16x16xbf16>
    %c0_8 = arith.constant 0 : index
    %c0_9 = arith.constant 0 : index
    %c2 = arith.constant 2 : index
    %10 = vector.load %arg3[%c0_8, %c0_9, %c2] : memref<1x16x256xbf16, #tpu.memory_space<vmem>>, vector<1x16x128xbf16>
    %11 = vector.shape_cast %10 : vector<1x16x128xbf16> to vector<16x128xbf16>
    %cst_10 = arith.constant dense<0.000000e+00> : vector<16x128xf32>
    %12 = tpu.matmul %9, %11, %cst_10 {dimension_numbers = #tpu.dot_dimension_numbers<[1], [0], [0], [1], [0, 0, 1, 1], [], []>} : vector<16x16xbf16>, vector<16x128xbf16>, vector<16x128xf32> -> vector<16x128xf32>
    %13 = arith.addf %7, %12 : vector<16x128xf32>
    %c2_11 = arith.constant 2 : index
    %c0_12 = arith.constant 0 : index
    %c0_13 = arith.constant 0 : index
    %14 = vector.load %arg4[%c2_11, %c0_12, %c0_13] : memref<3x16x16xbf16, #tpu.memory_space<vmem>>, vector<1x16x16xbf16>
    %15 = vector.shape_cast %14 : vector<1x16x16xbf16> to vector<16x16xbf16>
    %c0_14 = arith.constant 0 : index
    %c0_15 = arith.constant 0 : index
    %c4 = arith.constant 4 : index
    %16 = vector.load %arg3[%c0_14, %c0_15, %c4] : memref<1x16x256xbf16, #tpu.memory_space<vmem>>, vector<1x16x128xbf16>
    %17 = vector.shape_cast %16 : vector<1x16x128xbf16> to vector<16x128xbf16>
    %cst_16 = arith.constant dense<0.000000e+00> : vector<16x128xf32>
    %18 = tpu.matmul %15, %17, %cst_16 {dimension_numbers = #tpu.dot_dimension_numbers<[1], [0], [0], [1], [0, 0, 1, 1], [], []>} : vector<16x16xbf16>, vector<16x128xbf16>, vector<16x128xf32> -> vector<16x128xf32>
    %19 = arith.addf %13, %18 : vector<16x128xf32>
    %c0_i32_17 = arith.constant 0 : i32
    %20 = arith.cmpi eq, %arg2, %c0_i32_17 : i32
    %21 = arith.extui %20 : i1 to i32
    %c0_i32_18 = arith.constant 0 : i32
    %22 = arith.cmpi ne, %21, %c0_i32_18 : i32
    scf.if %22 {
      %26 = tpu.iota {dimensions = array<i32: 1>} : vector<16x128xi32>
      %c16_i32 = arith.constant 16 : i32
      %27 = vector.broadcast %c16_i32 : i32 to vector<16x128xi32>
      %28 = arith.cmpi slt, %26, %27 : vector<16x128xi32>
      %cst_20 = arith.constant 0.000000e+00 : f32
      %29 = vector.broadcast %cst_20 : f32 to vector<16x128xf32>
      %30 = arith.select %28, %19, %29 : vector<16x128xi1>, vector<16x128xf32>
      %c0_21 = arith.constant 0 : index
      %c0_22 = arith.constant 0 : index
      %c0_23 = arith.constant 0 : index
      %31 = vector.load %arg5[%c0_21, %c0_22, %c0_23] : memref<1x16x1xf32, #tpu.memory_space<vmem>>, vector<1x16x1xf32>
      %32 = vector.shape_cast %31 : vector<1x16x1xf32> to vector<16x1xf32>
      %cst_24 = arith.constant dense<0.000000e+00> : vector<16xf32>
      %33 = vector.multi_reduction <add>, %30, %cst_24 [1] : vector<16x128xf32> to vector<16xf32>
      %34 = vector.shape_cast %33 : vector<16xf32> to vector<16x1xf32>
      %35 = arith.addf %32, %34 : vector<16x1xf32>
      %c0_25 = arith.constant 0 : index
      %c0_26 = arith.constant 0 : index
      %c0_27 = arith.constant 0 : index
      %36 = vector.load %arg5[%c0_25, %c0_26, %c0_27] : memref<1x16x1xf32, #tpu.memory_space<vmem>>, vector<1x16x1xf32>
      %37 = vector.shape_cast %36 : vector<1x16x1xf32> to vector<16x1xf32>
      %38 = vector.shape_cast %35 : vector<16x1xf32> to vector<1x16x1xf32>
      tpu.vector_store %arg5[%c0_25, %c0_26, %c0_27], %38 {strides = array<i32>} : memref<1x16x1xf32, #tpu.memory_space<vmem>>, vector<1x16x1xf32>,
      %c0_28 = arith.constant 0 : index
      %c0_29 = arith.constant 0 : index
      %c0_30 = arith.constant 0 : index
      %39 = vector.load %arg6[%c0_28, %c0_29, %c0_30] : memref<1x16x1xf32, #tpu.memory_space<vmem>>, vector<1x16x1xf32>
      %40 = vector.shape_cast %39 : vector<1x16x1xf32> to vector<16x1xf32>
      %41 = arith.mulf %30, %30 : vector<16x128xf32>
      %cst_31 = arith.constant dense<0.000000e+00> : vector<16xf32>
      %42 = vector.multi_reduction <add>, %41, %cst_31 [1] : vector<16x128xf32> to vector<16xf32>
      %43 = vector.shape_cast %42 : vector<16xf32> to vector<16x1xf32>
      %44 = arith.addf %40, %43 : vector<16x1xf32>
      %c0_32 = arith.constant 0 : index
      %c0_33 = arith.constant 0 : index
      %c0_34 = arith.constant 0 : index
      %45 = vector.load %arg6[%c0_32, %c0_33, %c0_34] : memref<1x16x1xf32, #tpu.memory_space<vmem>>, vector<1x16x1xf32>
      %46 = vector.shape_cast %45 : vector<1x16x1xf32> to vector<16x1xf32>
      %47 = vector.shape_cast %44 : vector<16x1xf32> to vector<1x16x1xf32>
      tpu.vector_store %arg6[%c0_32, %c0_33, %c0_34], %47 {strides = array<i32>} : memref<1x16x1xf32, #tpu.memory_space<vmem>>, vector<1x16x1xf32>,
    } else {
    }
    %true = arith.constant true
    %23 = arith.xori %20, %true : i1
    %24 = arith.extui %23 : i1 to i32
    %c0_i32_19 = arith.constant 0 : i32
    %25 = arith.cmpi ne, %24, %c0_i32_19 : i32
    scf.if %25 {
      %c0_20 = arith.constant 0 : index
      %c0_21 = arith.constant 0 : index
      %c0_22 = arith.constant 0 : index
      %26 = vector.load %arg5[%c0_20, %c0_21, %c0_22] : memref<1x16x1xf32, #tpu.memory_space<vmem>>, vector<1x16x1xf32>
      %27 = vector.shape_cast %26 : vector<1x16x1xf32> to vector<16x1xf32>
      %cst_23 = arith.constant dense<0.000000e+00> : vector<16xf32>
      %28 = vector.multi_reduction <add>, %19, %cst_23 [1] : vector<16x128xf32> to vector<16xf32>
      %29 = vector.shape_cast %28 : vector<16xf32> to vector<16x1xf32>
      %30 = arith.addf %27, %29 : vector<16x1xf32>
      %c0_24 = arith.constant 0 : index
      %c0_25 = arith.constant 0 : index
      %c0_26 = arith.constant 0 : index
      %31 = vector.load %arg5[%c0_24, %c0_25, %c0_26] : memref<1x16x1xf32, #tpu.memory_space<vmem>>, vector<1x16x1xf32>
      %32 = vector.shape_cast %31 : vector<1x16x1xf32> to vector<16x1xf32>
      %33 = vector.shape_cast %30 : vector<16x1xf32> to vector<1x16x1xf32>
      tpu.vector_store %arg5[%c0_24, %c0_25, %c0_26], %33 {strides = array<i32>} : memref<1x16x1xf32, #tpu.memory_space<vmem>>, vector<1x16x1xf32>,
      %c0_27 = arith.constant 0 : index
      %c0_28 = arith.constant 0 : index
      %c0_29 = arith.constant 0 : index
      %34 = vector.load %arg6[%c0_27, %c0_28, %c0_29] : memref<1x16x1xf32, #tpu.memory_space<vmem>>, vector<1x16x1xf32>
      %35 = vector.shape_cast %34 : vector<1x16x1xf32> to vector<16x1xf32>
      %36 = arith.mulf %19, %19 : vector<16x128xf32>
      %cst_30 = arith.constant dense<0.000000e+00> : vector<16xf32>
      %37 = vector.multi_reduction <add>, %36, %cst_30 [1] : vector<16x128xf32> to vector<16xf32>
      %38 = vector.shape_cast %37 : vector<16xf32> to vector<16x1xf32>
      %39 = arith.addf %35, %38 : vector<16x1xf32>
      %c0_31 = arith.constant 0 : index
      %c0_32 = arith.constant 0 : index
      %c0_33 = arith.constant 0 : index
      %40 = vector.load %arg6[%c0_31, %c0_32, %c0_33] : memref<1x16x1xf32, #tpu.memory_space<vmem>>, vector<1x16x1xf32>
      %41 = vector.shape_cast %40 : vector<1x16x1xf32> to vector<16x1xf32>
      %42 = vector.shape_cast %39 : vector<16x1xf32> to vector<1x16x1xf32>
      tpu.vector_store %arg6[%c0_31, %c0_32, %c0_33], %42 {strides = array<i32>} : memref<1x16x1xf32, #tpu.memory_space<vmem>>, vector<1x16x1xf32>,
    } else {
    }
    return
  }
  func.func @transform_0(%arg0: i32, %arg1: i32, %arg2: i32) -> (i32, i32, i32) {
    %c1_i32 = arith.constant 1 : i32
    %0 = arith.muli %arg1, %c1_i32 : i32
    %1 = arith.addi %0, %arg2 : i32
    %c0_i32 = arith.constant 0 : i32
    %c0_i32_0 = arith.constant 0 : i32
    %c0_i32_1 = arith.constant 0 : i32
    return %1, %c0_i32, %c0_i32_0 : i32, i32, i32
  }
  func.func @transform_1(%arg0: i32, %arg1: i32, %arg2: i32) -> (i32, i32, i32) {
    %c0_i32 = arith.constant 0 : i32
    %c0_i32_0 = arith.constant 0 : i32
    %c0_i32_1 = arith.constant 0 : i32
    return %c0_i32, %arg0, %c0_i32_0 : i32, i32, i32
  }
  func.func @transform_2(%arg0: i32, %arg1: i32, %arg2: i32) -> (i32, i32, i32) {
    %c0_i32 = arith.constant 0 : i32
    %c0_i32_0 = arith.constant 0 : i32
    return %arg1, %arg0, %c0_i32 : i32, i32, i32
  }
  func.func @transform_3(%arg0: i32, %arg1: i32, %arg2: i32) -> (i32, i32, i32) {
    %c0_i32 = arith.constant 0 : i32
    %c0_i32_0 = arith.constant 0 : i32
    return %arg1, %arg0, %c0_i32 : i32, i32, i32
  }
}

</mosaic_0001>

<llo_original>
// kernel: tpu_custom_call.1
$region0: #{tpu_custom_call.1}
  #allocation0 [shape = 'u32[]', space=smem, size = 0x4, offset = 0x4, fixed_abs, tag = 'smem constant byte address 0x4 - core index']
  #allocation1 [shape = 'u32[72,128]{1,0:T(1,128)}', space=vmem, size = 0x9000, scoped, tag = 'internal scratch']
  %s0 = inlined_call_operand.hbm [shape: bf16[2,16,256], index: 0, kind: input, shape index: {}]
  %s1 = inlined_call_operand.hbm [shape: bf16[3,16,16], index: 1, kind: input, shape index: {}]
  %s2 = inlined_call_operand.vmem [shape: f32[2,16,1], index: 2, kind: output, shape index: {0}]
  %s3 = inlined_call_operand.vmem [shape: f32[2,16,1], index: 3, kind: output, shape index: {1}]
  %4 = xla_tuple %s2, %s3
  %s5 = sld [smem:[#allocation0]]
  $region69: #{tpu_custom_call.1} parent=0
    _
  %s7 = ssub.s32 1, %s5
  %s8 = scalar_select 0, %s7, %s5
  $region1: #{tpu_custom_call.1} parent=0
    #allocation2 [shape = 'u8[16384]{0}', space=vmem, size = 0x4000, scoped, tag = 'input window, operand 0']
    #allocation3 [shape = 's32[2]{0}', space=sflag, size = 0x8, scoped, tag = 'scoped memory for tpu_custom_call.1']
    #allocation4 [shape = 'u8[12288]{0}', space=vmem, size = 0x3000, scoped, tag = 'input window, operand 1, single buffered']
    #allocation5 [shape = 's32[1]{0}', space=sflag, size = 0x4, scoped, tag = 'scoped memory for tpu_custom_call.1']
    %9 = vsyncpa [#allocation3], 0
    %s10 = scalar_lea.sflag [#allocation3], 1
    %11 = vsyncpa %s10, 0
    %12 = vsyncpa [#allocation5], 0
    loop: start=0, step=1, limit=4
    $region2: #{tpu_custom_call.1} parent=1 // loop_pre_header
      _
    $region3: #{tpu_custom_call.1} parent=1 // loop_header
      %s14 = sphi 0, %s18
      %p15 = scmp.ge.s32.totalorder %s14, 4
      %s21 = sphi 0, %s40
      %s22 = sphi 0, %s36
      %s23 = sphi 0, %s32
      %s24 = sphi 0, %s21
      %s25 = sphi 0, %s22
      %s26 = sphi 0, %s23
      %s27 = sphi 0, %s24
      %s28 = sphi 0, %s25
      %s29 = sphi 0, %s26
      %s45 = sphi 0, %s47
      %s48 = sphi 0, %s45
      %s49 = sphi 0, %s48
      %s65 = sphi 0, %s49
      %s71 = sphi 0, %s73
      %s74 = sphi 0, %s71
      %s75 = sphi 0, %s74
      %s91 = sphi 0, %s75
      %s99 = sphi 0, %s101
      %s102 = sphi 0, %s99
      %s103 = sphi 0, %s102
      %s119 = sphi 0, %s103
      %s127 = sphi 0, %s129
      %s130 = sphi 0, %s127
      %s131 = sphi 0, %s130
      %s147 = sphi 0, %s131
    $region4: #{tpu_custom_call.1} parent=1 // loop_header_branch
      %17 = sbr.rel (%p15) target = $region8
    $region5: #{tpu_custom_call.1} parent=1 // loop_body
      %s19 = ssub.s32 %s14, 1
      %s20 = ssub.s32 %s14, 2
      %s30 = sadd.s32 1, %s23
      %p31 = scmp.ge.s32.totalorder %s30, 1
      %s32 = scalar_select %p31, 0, %s30
      %s33 = sadd.s32 1, %s22
      %s34 = scalar_select %p31, %s33, %s22
      %p35 = scmp.ge.s32.totalorder %s34, 2
      %s36 = scalar_select %p35, 0, %s34
      %s37 = sadd.s32 1, %s21
      %s38 = scalar_select %p35, %s37, %s21
      %p39 = scmp.ge.s32.totalorder %s38, 1
      %s40 = scalar_select %p39, 0, %s38
      %s41 = sadd.s32 %s22, %s23
      %s42 = sadd.s32 %s36, %s32
      %s43 = ssub.s32 %s41, %s42
      %p44 = scmp.eq.s32.totalorder %s43, 0
      %s46 = sadd.s32 %s45, 1
      %s47 = scalar_select %p44, %s45, %s46
      %p50 = pneg %p44
      %p51 = scmp.eq.s32.totalorder %s14, 1
      %p52 = por %p50, %p51
      %p53 = scmp.ne.s32.totalorder %s45, %s48
      %p54 = scmp.eq.s32.totalorder %s14, 0
      %p55 = por %p53, %p54
      %p56 = scmp.ne.s32.totalorder %s45, %s48
      %p57 = scmp.eq.s32.totalorder %s19, 1
      %p58 = por %p56, %p57
      %p59 = scmp.ne.s32.totalorder %s48, %s49
      %p60 = scmp.eq.s32.totalorder %s19, 0
      %p61 = por %p59, %p60
      %p62 = scmp.ne.s32.totalorder %s48, %s49
      %p63 = scmp.eq.s32.totalorder %s20, 1
      %p64 = por %p62, %p63
      %p66 = scmp.ne.s32.totalorder %s49, %s65
      %p67 = scmp.eq.s32.totalorder %s20, 0
      %p68 = por %p66, %p67
      %s69 = ssub.s32 %s21, %s40
      %p70 = scmp.eq.s32.totalorder %s69, 0
      %s72 = sadd.s32 %s71, 1
      %s73 = scalar_select %p70, %s71, %s72
      %p76 = pneg %p70
      %p77 = scmp.eq.s32.totalorder %s14, 1
      %p78 = por %p76, %p77
      %p79 = scmp.ne.s32.totalorder %s71, %s74
      %p80 = scmp.eq.s32.totalorder %s14, 0
      %p81 = por %p79, %p80
      %p82 = scmp.ne.s32.totalorder %s71, %s74
      %p83 = scmp.eq.s32.totalorder %s19, 1
      %p84 = por %p82, %p83
      %p85 = scmp.ne.s32.totalorder %s74, %s75
      %p86 = scmp.eq.s32.totalorder %s19, 0
      %p87 = por %p85, %p86
      %p88 = scmp.ne.s32.totalorder %s74, %s75
      %p89 = scmp.eq.s32.totalorder %s20, 1
      %p90 = por %p88, %p89
      %p92 = scmp.ne.s32.totalorder %s75, %s91
      %p93 = scmp.eq.s32.totalorder %s20, 0
      %p94 = por %p92, %p93
      %s95 = ssub.s32 %s22, %s36
      %s96 = ssub.s32 %s21, %s40
      %s97 = sor.u32 %s95, %s96
      %p98 = scmp.eq.s32.totalorder %s97, 0
      %s100 = sadd.s32 %s99, 1
      %s101 = scalar_select %p98, %s99, %s100
      %p104 = pneg %p98
      %p105 = scmp.eq.s32.totalorder %s14, 1
      %p106 = por %p104, %p105
      %p107 = scmp.ne.s32.totalorder %s99, %s102
      %p108 = scmp.eq.s32.totalorder %s14, 0
      %p109 = por %p107, %p108
      %p110 = scmp.ne.s32.totalorder %s99, %s102
      %p111 = scmp.eq.s32.totalorder %s19, 1
      %p112 = por %p110, %p111
      %p113 = scmp.ne.s32.totalorder %s102, %s103
      %p114 = scmp.eq.s32.totalorder %s19, 0
      %p115 = por %p113, %p114
      %p116 = scmp.ne.s32.totalorder %s102, %s103
      %p117 = scmp.eq.s32.totalorder %s20, 1
      %p118 = por %p116, %p117
      %p120 = scmp.ne.s32.totalorder %s103, %s119
      %p121 = scmp.eq.s32.totalorder %s20, 0
      %p122 = por %p120, %p121
      %s123 = ssub.s32 %s22, %s36
      %s124 = ssub.s32 %s21, %s40
      %s125 = sor.u32 %s123, %s124
      %p126 = scmp.eq.s32.totalorder %s125, 0
      %s128 = sadd.s32 %s127, 1
      %s129 = scalar_select %p126, %s127, %s128
      %p132 = pneg %p126
      %p133 = scmp.eq.s32.totalorder %s14, 1
      %p134 = por %p132, %p133
      %p135 = scmp.ne.s32.totalorder %s127, %s130
      %p136 = scmp.eq.s32.totalorder %s14, 0
      %p137 = por %p135, %p136
      %p138 = scmp.ne.s32.totalorder %s127, %s130
      %p139 = scmp.eq.s32.totalorder %s19, 1
      %p140 = por %p138, %p139
      %p141 = scmp.ne.s32.totalorder %s130, %s131
      %p142 = scmp.eq.s32.totalorder %s19, 0
      %p143 = por %p141, %p142
      %p144 = scmp.ne.s32.totalorder %s130, %s131
      %p145 = scmp.eq.s32.totalorder %s20, 1
      %p146 = por %p144, %p145
      %p148 = scmp.ne.s32.totalorder %s131, %s147
      %p149 = scmp.eq.s32.totalorder %s20, 0
      %p150 = por %p148, %p149
      %p151 = scmp.le.s32.totalorder 1, %s14
      %p152 = scmp.lt.s32.totalorder %s14, 3
      %p153 = pnand %p151, %p152
      %p154 = pneg %p153
      // Predicated region
      $region9: #{tpu_custom_call.1} parent=5 // pred_check
        _
      $region10: #{tpu_custom_call.1} parent=5 // pred_check_branch
        %156 = sbr.rel (%p153) target = $region12
      $region11: #{tpu_custom_call.1} parent=5 // pred_region
        %s157 = ssub.s32 %s14, 1
        // Predicated region
        $region13: #{tpu_custom_call.1} parent=11 // pred_check
          %p158 = pneg %p87
        $region14: #{tpu_custom_call.1} parent=11 // pred_check_branch
          %160 = sbr.rel (%p158) target = $region16
        $region15: #{tpu_custom_call.1} parent=11 // pred_region
          %s161 = smul.u32 2, %s24
          %163 = vsyncadd [#allocation5], 0
          %s164 = smul.addr %s161, 4
          %s165 = scalar_lea.hbm %s1, %s164
          %s166 = sshll.u32 %s165, 4
          %s167 = int_to_ptr.hbm [resolvable:$true] %s166
          %s168 = sshll.u32 [#allocation4], 4
          %s169 = int_to_ptr.vmem [resolvable:$true] %s168
          %174 = dma.hbm_to_vmem [thread:$0]  %s167, 384, %s169, [#allocation5], 64, 64, 4
        $region16: #{tpu_custom_call.1} parent=11 // pred_fallthru
          _
      $region12: #{tpu_custom_call.1} parent=5 // pred_fallthru
        _
      %p175 = scmp.lt.s32.totalorder %s14, 2
      // Predicated region
      $region17: #{tpu_custom_call.1} parent=5 // pred_check
        %p176 = pneg %p175
      $region18: #{tpu_custom_call.1} parent=5 // pred_check_branch
        %178 = sbr.rel (%p176) target = $region20
      $region19: #{tpu_custom_call.1} parent=5 // pred_region
        // Predicated region
        $region21: #{tpu_custom_call.1} parent=19 // pred_check
          %p179 = pneg %p55
        $region22: #{tpu_custom_call.1} parent=19 // pred_check_branch
          %181 = sbr.rel (%p179) target = $region24
        $region23: #{tpu_custom_call.1} parent=19 // pred_region
          %s182 = sand.u32 %s45, 1
          %s183 = scalar_lea.sflag [#allocation3], %s182
          %s184 = sand.u32 %s45, 1
          %s185 = smul.addr %s184, 16
          %s186 = scalar_lea.vmem [#allocation2], %s185
          %s187 = sadd.s32 %s22, %s23
          %189 = vsyncadd %s183, 0
          %s190 = smul.addr %s187, 4
          %s191 = smul.addr %s190, 4
          %s192 = scalar_lea.hbm %s0, %s191
          %s193 = sshll.u32 %s192, 4
          %s194 = int_to_ptr.hbm [resolvable:$true] %s193
          %s195 = sshll.u32 %s186, 4
          %s196 = int_to_ptr.vmem [resolvable:$true] %s195
          %201 = dma.hbm_to_vmem [thread:$0]  %s194, 256, %s196, %s183, 128, 128, 8
        $region24: #{tpu_custom_call.1} parent=19 // pred_fallthru
          _
      $region20: #{tpu_custom_call.1} parent=5 // pred_fallthru
        _
      %p202 = scmp.le.s32.totalorder 1, %s14
      %p203 = scmp.lt.s32.totalorder %s14, 3
      %p204 = pnand %p202, %p203
      %p205 = pneg %p204
      // Predicated region
      $region25: #{tpu_custom_call.1} parent=5 // pred_check
        _
      $region26: #{tpu_custom_call.1} parent=5 // pred_check_branch
        %207 = sbr.rel (%p204) target = $region28
      $region27: #{tpu_custom_call.1} parent=5 // pred_region
        %s208 = ssub.s32 %s14, 1
        %s209 = sand.u32 %s48, 1
        %s210 = scalar_lea.sflag [#allocation3], %s209
        %s211 = sand.u32 %s48, 1
        %s212 = smul.addr %s211, 16
        %s213 = scalar_lea.vmem [#allocation2], %s212
        // Predicated region
        $region29: #{tpu_custom_call.1} parent=27 // pred_check
          %p214 = pneg %p61
        $region30: #{tpu_custom_call.1} parent=27 // pred_check_branch
          %216 = sbr.rel (%p214) target = $region32
        $region31: #{tpu_custom_call.1} parent=27 // pred_region
          %218 = dma.done %s210, 256
        $region32: #{tpu_custom_call.1} parent=27 // pred_fallthru
          _
        // Predicated region
        $region33: #{tpu_custom_call.1} parent=27 // pred_check
          %p219 = pneg %p87
        $region34: #{tpu_custom_call.1} parent=27 // pred_check_branch
          %221 = sbr.rel (%p219) target = $region36
        $region35: #{tpu_custom_call.1} parent=27 // pred_region
          %223 = dma.done [#allocation5], 384
        $region36: #{tpu_custom_call.1} parent=27 // pred_fallthru
          _
        %s224 = sand.u32 %s48, 1
        %s225 = scalar_lea.sflag [#allocation3], %s224
        %s226 = sand.u32 %s48, 1
        %s227 = smul.addr %s226, 16
        %s228 = scalar_lea.vmem [#allocation2], %s227
        %p229 = pneg %p61
        %p230 = pneg %p58
        %p231 = pneg %p87
        %p232 = pneg %p84
        %p233 = pneg %p115
        %p234 = pneg %p112
        %s235 = smul.u32 2, %s24
        %p236 = scmp.lt.s32.totalorder %s25, 1
        %s237 = scalar_select %p236, %s25, 1
        %p238 = scmp.lt.s32.totalorder %s235, 1
        %s239 = scalar_select %p238, %s235, 1
        %s240 = smul.addr %s237, 2
        %s241 = sadd.s32 %s239, %s240
        %s242 = smul.addr %s241, 8
        %s243 = scalar_lea.vmem %s2, %s242
        %p244 = pneg %p143
        %p245 = pneg %p140
        %s246 = smul.u32 2, %s24
        %p247 = scmp.lt.s32.totalorder %s25, 1
        %s248 = scalar_select %p247, %s25, 1
        %p249 = scmp.lt.s32.totalorder %s246, 1
        %s250 = scalar_select %p249, %s246, 1
        %s251 = smul.addr %s248, 2
        %s252 = sadd.s32 %s250, %s251
        %s253 = smul.addr %s252, 8
        %s254 = scalar_lea.vmem %s3, %s253
        %s255 = sadd.s32 %s25, %s26
        %s256 = smul.u32 2, %s24
        %s257 = smul.u32 2, %s24
        %p258 = scmp.lt.s32.totalorder %s25, 1
        %s259 = scalar_select %p258, %s25, 1
        %p260 = scmp.lt.s32.totalorder %s257, 1
        %s261 = scalar_select %p260, %s257, 1
        %s262 = smul.addr %s259, 2
        %s263 = sadd.s32 %s261, %s262
        %s264 = smul.addr %s263, 8
        %s265 = scalar_lea.vmem %s2, %s264
        %s266 = smul.u32 2, %s24
        %s267 = smul.u32 2, %s24
        %p268 = scmp.lt.s32.totalorder %s25, 1
        %s269 = scalar_select %p268, %s25, 1
        %p270 = scmp.lt.s32.totalorder %s267, 1
        %s271 = scalar_select %p270, %s267, 1
        %s272 = smul.addr %s269, 2
        %s273 = sadd.s32 %s271, %s272
        %s274 = smul.addr %s273, 8
        %s275 = scalar_lea.vmem %s3, %s274
        %s276 = smul.u32 2, %s24
        %p278 = scmp.eq.s32.totalorder %s26, 0
        // Predicated region
        $region37: #{tpu_custom_call.1} parent=27 // pred_check
          %p279 = pneg %p278
        $region38: #{tpu_custom_call.1} parent=27 // pred_check_branch
          %281 = sbr.rel (%p279) target = $region40
        $region39: #{tpu_custom_call.1} parent=27 // pred_region
          %vm282 = vcmask 7168
          %283 = vst.msk [vmem:[%s265] sm:$0xff] %vm282, 0.0
          %284 = vst.msk [vmem:[%s265 + $0x8] sm:$0xff] %vm282, 0.0
          %285 = vst.msk [vmem:[%s275] sm:$0xff] %vm282, 0.0
          %286 = vst.msk [vmem:[%s275 + $0x8] sm:$0xff] %vm282, 0.0
        $region40: #{tpu_custom_call.1} parent=27 // pred_fallthru
          _
        %v287 = vld [vmem:[#allocation4] sm:$0xf]
        %v288 = vld [vmem:[#allocation4 + $0x4] sm:$0xf]
        %v289 = vld [vmem:[%s213] sm:$0xf]
        %v290 = vld [vmem:[%s213 + $0x8] sm:$0xf]
        %s291 = scalar_lea.vmem [#allocation4], 8
        %v292 = vld [vmem:[%s291] sm:$0xf]
        %v293 = vld [vmem:[%s291 + $0x4] sm:$0xf]
        %v294 = vld [vmem:[%s213] sm:$0xff]
        %v295 = vld [vmem:[%s213 + $0x8] sm:$0xff]
        %v298 = vunpack.c.l.b16 %v292
        %v299 = vunpack.c.l.b16 %v293
        %v300 = vpack.c.b16 %v299, %v298
        %v303 = vunpack.c.l.b16 %v294
        %v304 = vunpack.c.h.b16 %v294
        %v305 = vunpack.c.l.b16 %v295
        %v306 = vunpack.c.h.b16 %v295
        %v307 = vpack.c.b16 %v305, %v303
        %v308 = vpack.c.b16 %v306, %v304
        %309 = vrot.lane.b32.xlu0 %v307, 126
        %v310 = vpop.permute.xlu0 %309
        %311 = vrot.lane.b32.xlu0 %v308, 126
        %v312 = vpop.permute.xlu0 %311
        %vm313 = vcmask 1031168
        %v314 = vsel %vm313, %v310, %v312
        %vm316 = vcmask 130048
        %v318 = vsel %vm316, %v300, 0
        %320 = vmatpush.bf16.msra.mxu0 0
        %321 = vmatpush.bf16.msra.mxu0 0
        %322 = vmatpush.bf16.msra.mxu0 0
        %323 = vmatpush.bf16.msra.mxu0 0
        %324 = vmatpush.bf16.msra.mxu0 0
        %325 = vmatpush.bf16.msra.mxu0 0
        %326 = vmatpush.bf16.msra.mxu0 0
        %327 = vmatpush.bf16.msra.mxu0 %v314
        %328 = vmatmul.bf16.gmra.mxu0 %v318
        %v329 = vpop.f32.mrf.mxu0
        %v330 = vadd.f32 0.0, %v329
        %v331 = vpop.f32.mrf.mxu0
        %v332 = vadd.f32 0.0, %v331
        %333 = vdwg.mxu0
        %v336 = vunpack.c.l.b16 %v287
        %v337 = vunpack.c.l.b16 %v288
        %v338 = vpack.c.b16 %v337, %v336
        %v341 = vunpack.c.l.b16 %v289
        %v342 = vunpack.c.l.b16 %v290
        %v343 = vpack.c.b16 %v342, %v341
        %v346 = vsel %vm316, %v338, 0
        %348 = vmatpush.bf16.msra.mxu0 0
        %349 = vmatpush.bf16.msra.mxu0 0
        %350 = vmatpush.bf16.msra.mxu0 0
        %351 = vmatpush.bf16.msra.mxu0 0
        %352 = vmatpush.bf16.msra.mxu0 0
        %353 = vmatpush.bf16.msra.mxu0 0
        %354 = vmatpush.bf16.msra.mxu0 0
        %355 = vmatpush.bf16.msra.mxu0 %v343
        %356 = vmatmul.bf16.gmra.mxu0 %v346
        %v357 = vpop.f32.mrf.mxu0
        %v358 = vadd.f32 %v330, %v357
        %v359 = vpop.f32.mrf.mxu0
        %v360 = vadd.f32 %v332, %v359
        %361 = vdwg.mxu0
        %s362 = scalar_lea.vmem [#allocation4], 16
        %v363 = vld [vmem:[%s362] sm:$0xf]
        %v364 = vld [vmem:[%s362 + $0x4] sm:$0xf]
        %v367 = vunpack.c.l.b16 %v363
        %v368 = vunpack.c.l.b16 %v364
        %v369 = vpack.c.b16 %v368, %v367
        %370 = vrot.lane.b32.xlu0 %v307, 124
        %v371 = vpop.permute.xlu0 %370
        %372 = vrot.lane.b32.xlu0 %v308, 124
        %v373 = vpop.permute.xlu0 %372
        %vm374 = vcmask 1014784
        %v375 = vsel %vm374, %v371, %v373
        %v378 = vsel %vm316, %v369, 0
        %380 = vmatpush.bf16.msra.mxu0 0
        %381 = vmatpush.bf16.msra.mxu0 0
        %382 = vmatpush.bf16.msra.mxu0 0
        %383 = vmatpush.bf16.msra.mxu0 0
        %384 = vmatpush.bf16.msra.mxu0 0
        %385 = vmatpush.bf16.msra.mxu0 0
        %386 = vmatpush.bf16.msra.mxu0 0
        %387 = vmatpush.bf16.msra.mxu0 %v375
        %388 = vmatmul.bf16.gmra.mxu0 %v378
        %v389 = vpop.f32.mrf.mxu0
        %v390 = vadd.f32 0.0, %v389
        %v391 = vpop.f32.mrf.mxu0
        %v392 = vadd.f32 0.0, %v391
        %393 = vdwg.mxu0
        %v394 = vadd.f32 %v358, %v390
        %v395 = vadd.f32 %v360, %v392
        // Predicated region
        $region41: #{tpu_custom_call.1} parent=27 // pred_check
          %p396 = pneg %p278
        $region42: #{tpu_custom_call.1} parent=27 // pred_check_branch
          %398 = sbr.rel (%p396) target = $region44
        $region43: #{tpu_custom_call.1} parent=27 // pred_region
          %v399 = vlaneseq
          %v400 = vand.u32 %v399, 127
          %vm401 = vcmp.lt.s32.totalorder %v400, 16
          %v402 = vsel %vm401, %v394, 0.0
          %v403 = vsel %vm401, %v395, 0.0
          %v404 = vld [vmem:[%s265] sm:$0xff]
          %v405 = vld [vmem:[%s265 + $0x8] sm:$0xff]
          %406 = vadd.xlane.f32.xlu0 %v402
          %v407 = vpop.xlane.xlu0 %406
          %408 = vadd.xlane.f32.xlu0 %v403
          %v409 = vpop.xlane.xlu0 %408
          %v410 = vadd.f32 %v404, %v407
          %v411 = vadd.f32 %v405, %v409
          %vm412 = vcmask 7168
          %413 = vst.msk [vmem:[%s265] sm:$0xff] %vm412, %v410
          %414 = vst.msk [vmem:[%s265 + $0x8] sm:$0xff] %vm412, %v411
          %v415 = vld [vmem:[%s275] sm:$0xff]
          %v416 = vld [vmem:[%s275 + $0x8] sm:$0xff]
          %v417 = vmul.f32 %v402, %v402
          %v418 = vmul.f32 %v403, %v403
          %419 = vadd.xlane.f32.xlu0 %v417
          %v420 = vpop.xlane.xlu0 %419
          %421 = vadd.xlane.f32.xlu0 %v418
          %v422 = vpop.xlane.xlu0 %421
          %v423 = vadd.f32 %v415, %v420
          %v424 = vadd.f32 %v416, %v422
          %425 = vst.msk [vmem:[%s275] sm:$0xff] %vm412, %v423
          %426 = vst.msk [vmem:[%s275 + $0x8] sm:$0xff] %vm412, %v424
        $region44: #{tpu_custom_call.1} parent=27 // pred_fallthru
          _
        %p427 = scmp.ne.s32.totalorder %s26, 0
        // Predicated region
        $region45: #{tpu_custom_call.1} parent=27 // pred_check
          %p428 = pneg %p427
        $region46: #{tpu_custom_call.1} parent=27 // pred_check_branch
          %430 = sbr.rel (%p428) target = $region48
        $region47: #{tpu_custom_call.1} parent=27 // pred_region
          %v431 = vld [vmem:[%s265] sm:$0xff]
          %v432 = vld [vmem:[%s265 + $0x8] sm:$0xff]
          %433 = vadd.xlane.f32.xlu0 %v394
          %v434 = vpop.xlane.xlu0 %433
          %435 = vadd.xlane.f32.xlu0 %v395
          %v436 = vpop.xlane.xlu0 %435
          %v437 = vadd.f32 %v431, %v434
          %v438 = vadd.f32 %v432, %v436
          %vm439 = vcmask 7168
          %440 = vst.msk [vmem:[%s265] sm:$0xff] %vm439, %v437
          %441 = vst.msk [vmem:[%s265 + $0x8] sm:$0xff] %vm439, %v438
          %v442 = vld [vmem:[%s275] sm:$0xff]
          %v443 = vld [vmem:[%s275 + $0x8] sm:$0xff]
          %v444 = vmul.f32 %v394, %v394
          %v445 = vmul.f32 %v395, %v395
          %446 = vadd.xlane.f32.xlu0 %v444
          %v447 = vpop.xlane.xlu0 %446
          %448 = vadd.xlane.f32.xlu0 %v445
          %v449 = vpop.xlane.xlu0 %448
          %v450 = vadd.f32 %v442, %v447
          %v451 = vadd.f32 %v443, %v449
          %452 = vst.msk [vmem:[%s275] sm:$0xff] %vm439, %v450
          %453 = vst.msk [vmem:[%s275 + $0x8] sm:$0xff] %vm439, %v451
        $region48: #{tpu_custom_call.1} parent=27 // pred_fallthru
          _
        %s454 = smul.u32 2, %s24
        %p455 = scmp.lt.s32.totalorder %s25, 1
        %s456 = scalar_select %p455, %s25, 1
        %p457 = scmp.lt.s32.totalorder %s454, 1
        %s458 = scalar_select %p457, %s454, 1
        %s459 = smul.addr %s456, 2
        %s460 = sadd.s32 %s458, %s459
        %s461 = smul.addr %s460, 8
        %s462 = scalar_lea.vmem %s2, %s461
        %s463 = smul.u32 2, %s24
        %p464 = scmp.lt.s32.totalorder %s25, 1
        %s465 = scalar_select %p464, %s25, 1
        %p466 = scmp.lt.s32.totalorder %s463, 1
        %s467 = scalar_select %p466, %s463, 1
        %s468 = smul.addr %s465, 2
        %s469 = sadd.s32 %s467, %s468
        %s470 = smul.addr %s469, 8
        %s471 = scalar_lea.vmem %s3, %s470
        // Predicated region
        $region49: #{tpu_custom_call.1} parent=27 // pred_check
          %p472 = pneg %p112
        $region50: #{tpu_custom_call.1} parent=27 // pred_check_branch
          %474 = sbr.rel (%p472) target = $region52
        $region51: #{tpu_custom_call.1} parent=27 // pred_region
          %s475 = smul.u32 2, %s24
        $region52: #{tpu_custom_call.1} parent=27 // pred_fallthru
          _
        // Predicated region
        $region53: #{tpu_custom_call.1} parent=27 // pred_check
          %p476 = pneg %p140
        $region54: #{tpu_custom_call.1} parent=27 // pred_check_branch
          %478 = sbr.rel (%p476) target = $region56
        $region55: #{tpu_custom_call.1} parent=27 // pred_region
          %s479 = smul.u32 2, %s24
        $region56: #{tpu_custom_call.1} parent=27 // pred_fallthru
          _
      $region28: #{tpu_custom_call.1} parent=5 // pred_fallthru
        _
      %p480 = scmp.le.s32.totalorder 2, %s14
      // Predicated region
      $region57: #{tpu_custom_call.1} parent=5 // pred_check
        %p481 = pneg %p480
      $region58: #{tpu_custom_call.1} parent=5 // pred_check_branch
        %483 = sbr.rel (%p481) target = $region60
      $region59: #{tpu_custom_call.1} parent=5 // pred_region
        %s484 = ssub.s32 %s14, 2
        // Predicated region
        $region61: #{tpu_custom_call.1} parent=59 // pred_check
          %p485 = pneg %p118
        $region62: #{tpu_custom_call.1} parent=59 // pred_check_branch
          %487 = sbr.rel (%p485) target = $region64
        $region63: #{tpu_custom_call.1} parent=59 // pred_region
          %s488 = smul.u32 2, %s27
          %p489 = scmp.lt.s32.totalorder %s28, 1
          %s490 = scalar_select %p489, %s28, 1
          %p491 = scmp.lt.s32.totalorder %s488, 1
          %s492 = scalar_select %p491, %s488, 1
          %s493 = smul.addr %s490, 2
          %s494 = sadd.s32 %s492, %s493
          %s495 = smul.addr %s494, 8
          %s496 = scalar_lea.vmem %s2, %s495
        $region64: #{tpu_custom_call.1} parent=59 // pred_fallthru
          _
        // Predicated region
        $region65: #{tpu_custom_call.1} parent=59 // pred_check
          %p497 = pneg %p146
        $region66: #{tpu_custom_call.1} parent=59 // pred_check_branch
          %499 = sbr.rel (%p497) target = $region68
        $region67: #{tpu_custom_call.1} parent=59 // pred_region
          %s500 = smul.u32 2, %s27
          %p501 = scmp.lt.s32.totalorder %s28, 1
          %s502 = scalar_select %p501, %s28, 1
          %p503 = scmp.lt.s32.totalorder %s500, 1
          %s504 = scalar_select %p503, %s500, 1
          %s505 = smul.addr %s502, 2
          %s506 = sadd.s32 %s504, %s505
          %s507 = smul.addr %s506, 8
          %s508 = scalar_lea.vmem %s3, %s507
        $region68: #{tpu_custom_call.1} parent=59 // pred_fallthru
          _
      $region60: #{tpu_custom_call.1} parent=5 // pred_fallthru
        _
    $region6: #{tpu_custom_call.1} parent=1 // loop_footer
      %s18 = sadd.s32 1, %s14
    $region7: #{tpu_custom_call.1} parent=1 // loop_footer_branch
      %13 = sbr.rel target = $region3
    $region8: #{tpu_custom_call.1} parent=1 // loop_exit
      _
    %509 = vsyncpa [#allocation3], 1
    %s510 = scalar_lea.sflag [#allocation3], 1
    %511 = vsyncpa %s510, 1
    %512 = vsyncpa [#allocation5], 1

</llo_original>
